<compile_context>
chip_gen: v7x
topology: tpu7x:2x2x1
jax: 0.10.0
libtpu: 0.0.40
codegen_flags: <defaults>
</compile_context>

<pallas_src>
import jax
import jax.numpy as jnp
from jax import lax
from jax.experimental import pallas as pl
from jax.experimental.pallas import tpu as pltpu


N_STATS = 8  # per-tile stats lanes: [tile max, tile sum-exp, sum(t*pred), 0, 0, 0, 0, 0]


# ------------------------- kernel 1: prepare (one shot) ----------------------

def prepare_kernel(bn_ref, q_ref, w_ref, b_ref, head_ref, s_ref):
    # bn_ref (SMEM, shape (8,)):
    #   [0..3] = bn0 (scale_re, shift_re, scale_im, shift_im)  (eval-mode BN folded)
    #   [4..7] = bn2 (scale_re, shift_re, scale_im, shift_im)
    # hidden2rel: rel = q @ W + b
    rel = (jnp.dot(q_ref[...], w_ref[...], preferred_element_type=jnp.float32)
           + b_ref[...])
    D = rel.shape[1] // 2
    # torch.chunk(x, 2, dim=1): first half real, second half imaginary.
    rer, imr = rel[:, :D], rel[:, D:]

    head = head_ref[...].astype(jnp.float32)
    reh = head[:, :D] * bn_ref[0] + bn_ref[1]
    imh = head[:, D:] * bn_ref[2] + bn_ref[3]

    # ComplEx bilinear interaction + bn2 fold.
    re_s = (reh * rer - imh * imr) * bn_ref[4] + bn_ref[5]
    im_s = (reh * imr + imh * rer) * bn_ref[6] + bn_ref[7]

    # Packed [B, 2*D] operand so the scoring matmul is a single K=2*D contraction.
    s_ref[...] = jnp.concatenate([re_s, im_s], axis=1).astype(s_ref.dtype)


def prepare_score_vector(q_emb, w, b, head_emb, bn_params, out_dtype):
    B = q_emb.shape[0]
    ED = w.shape[1]
    return pl.pallas_call(
        prepare_kernel,
        out_shape=jax.ShapeDtypeStruct((B, ED), out_dtype),
        in_specs=[
            pl.BlockSpec(memory_space=pltpu.MemorySpace.SMEM),   # bn scalars
            pl.BlockSpec(memory_space=pltpu.MemorySpace.VMEM),   # q_emb [B, H]
            pl.BlockSpec(memory_space=pltpu.MemorySpace.VMEM),   # W [H, ED]
            pl.BlockSpec(memory_space=pltpu.MemorySpace.VMEM),   # b [1, ED]
            pl.BlockSpec(memory_space=pltpu.MemorySpace.VMEM),   # head_emb [B, ED]
        ],
        out_specs=pl.BlockSpec(memory_space=pltpu.MemorySpace.VMEM),
    )(bn_params, q_emb, w, b.reshape(1, -1), head_emb)


# --------------- kernel 2: fused ComplEx scoring + KL statistics -------------

def score_stats_kernel(s_ref, e_ref, t_ref, stats_ref):
    # s_ref: [B, ED]  packed score vector (resident across the grid)
    # e_ref: [tn, ED] entity-table tile (row-major, no transposed copy in HBM)
    # t_ref: [B, tn]  target tile (bf16, upcast here)
    pred = lax.dot_general(
        s_ref[...], e_ref[...],
        dimension_numbers=(((1,), (1,)), ((), ())),      # s @ e.T, K = ED
        preferred_element_type=jnp.float32)               # [B, tn] f32 accumulate

    t = t_ref[...].astype(jnp.float32)
    m = jnp.max(pred, axis=1, keepdims=True)                        # tile max
    l = jnp.sum(jnp.exp(pred - m), axis=1, keepdims=True)           # tile sum-exp
    tpred = jnp.sum(t * pred, axis=1, keepdims=True)                # sum t*pred
    # Pred-independent target moments are hoisted to the wrapper; only 3 lanes
    # of per-tile partials are emitted (padded to N_STATS).
    pad = jnp.zeros((m.shape[0], N_STATS - 3), jnp.float32)
    stats_ref[...] = jnp.concatenate([m, l, tpred, pad], axis=1)[None]


def _choose_tile(N, tn_target):
    # Keep at least 2 grid steps when possible so the "parallel" grid axis can
    # be split across TensorCores (v7x megacore).
    tn = min(tn_target, max(N // 2, 1))
    # Largest lane-aligned (multiple-of-128) divisor of N that is <= tn.
    cand = (tn // 128) * 128
    while cand >= 128 and N % cand != 0:
        cand -= 128
    if cand >= 128:
        return cand
    return N  # ragged / tiny table: single full tile (no padded rows ever enter the LSE)


def complex_kl_stats(s_packed, ent_emb, p_tail, *, tn=4096):
    # tn=4096 -> 1 MiB bf16 entity tiles at ED=128 (2 MiB double-buffered);
    # on v7x consider tn=8192 if xprof shows the pipeline still step-bound.
    B, ED = s_packed.shape
    N = ent_emb.shape[0]
    tn = _choose_tile(N, tn)
    assert N % tn == 0
    n_tiles = N // tn
    cost = pl.CostEstimate(
        flops=2 * B * N * ED,
        transcendentals=B * N,  # exp in the online logsumexp
        bytes_accessed=(N * ED * ent_emb.dtype.itemsize
                        + B * N * p_tail.dtype.itemsize
                        + B * ED * s_packed.dtype.itemsize
                        + n_tiles * B * N_STATS * 4))
    return pl.pallas_call(
        score_stats_kernel,
        out_shape=jax.ShapeDtypeStruct((n_tiles, B, N_STATS), jnp.float32),
        grid=(n_tiles,),
        in_specs=[
            pl.BlockSpec((B, ED), lambda j: (0, 0)),     # packed scores (resident)
            pl.BlockSpec((tn, ED), lambda j: (j, 0)),    # entity-table tile
            pl.BlockSpec((B, tn), lambda j: (0, j)),     # target tile
        ],
        out_specs=pl.BlockSpec((1, B, N_STATS), lambda j: (j, 0, 0)),
        compiler_params=pltpu.CompilerParams(
            dimension_semantics=("parallel",)),          # keep N split across TCs
        cost_estimate=cost,
    )(s_packed, ent_emb, p_tail)


def finalize_kl(stats, tsum, tabs, tlogt):
    # Combine tiny per-tile partials (pure JAX; a few scalars per batch row).
    # KL_row = sum_j p*(log p - log_softmax(pred))
    #        = (tlogt - log(T)*tsum - tpred + lse*tsum) / T,  T = max(sum|t|, eps)
    # (valid for non-negative targets, which the indicator p_tail is)
    m_t = stats[:, :, 0]                                   # [n_tiles, B]
    l_t = stats[:, :, 1]
    tpred = jnp.sum(stats[:, :, 2], axis=0)                # [B]

    M = jnp.max(m_t, axis=0)
    lse = M + jnp.log(jnp.sum(jnp.exp(m_t - M) * l_t, axis=0))      # logsumexp_N(pred)
    T = jnp.maximum(tabs, 1e-12)                                    # F.normalize eps
    kl_row = (tlogt - jnp.log(T) * tsum - tpred + lse * tsum) / T
    return jnp.sum(kl_row)                                          # reduction='sum'


# ------------------------------ forward glue ---------------------------------

def relation_extractor_forward(params, question_tokenized, attention_mask, p_head, p_tail):
    # TODO(synk): pretrained BertModel('bert-base-chinese') CLS encoder has no
    # in-script Pallas equivalent; replaced by a deterministic token-embedding
    # lookup + attention-masked mean pool producing the [B, hidden_dim] question
    # embedding consumed downstream.
    tok = params["tok_emb"][question_tokenized]                     # [B, S, H]
    mask = attention_mask.astype(jnp.float32)[..., None]            # [B, S, 1]
    q_emb = jnp.sum(tok * mask, axis=1) / jnp.maximum(jnp.sum(mask, axis=1), 1.0)

    head_emb = params["ent_emb"][p_head]                            # [B, 2*D] (nn.Embedding lookup)

    # Fused hidden2rel + BN0 + ComplEx bilinear + BN2 -> packed [B, 2*D] bf16.
    s_packed = prepare_score_vector(
        q_emb, params["w_h2r"], params["b_h2r"], head_emb, params["bn_params"],
        out_dtype=params["ent_emb"].dtype)

    # Pred-independent target moments, hoisted out of the grid loop (computed
    # once; XLA fuses the upcast into the reductions, no f32 [B, N] in HBM).
    t32 = p_tail.astype(jnp.float32)
    tsum = jnp.sum(t32, axis=1)
    tabs = jnp.sum(jnp.abs(t32), axis=1)
    safe_t = jnp.where(t32 > 0, t32, 1.0)
    tlogt = jnp.sum(jnp.where(t32 > 0, t32 * jnp.log(safe_t), 0.0), axis=1)  # xlogy(t, t)

    # Fused scoring + online logsumexp / sum(t*pred) over entity-table tiles
    # (target streamed in its storage dtype, bf16).
    stats = complex_kl_stats(s_packed, params["ent_emb"], p_tail)
    return finalize_kl(stats, tsum, tabs, tlogt)


def make_params(key, *, vocab, hidden_dim, relation_dim, num_entities):
    ks = jax.random.split(key, 8)
    ED = 2 * relation_dim  # ComplEx multiplier = 2

    tok_emb = 0.02 * jax.random.normal(ks[0], (vocab, hidden_dim), jnp.float32)
    w_h2r = 0.02 * jax.random.normal(ks[1], (hidden_dim, ED), jnp.float32)
    b_h2r = 0.01 * jax.random.normal(ks[2], (ED,), jnp.float32)
    # Entity table stored once, in bf16 (matmul operand; f32 accumulation in-kernel).
    # int8 (v5e/v6e) / fp8 (v7x) weight quantization would halve this stream if
    # accuracy permits; intentionally not applied here.
    ent_emb = jax.random.normal(ks[3], (num_entities, ED), jnp.float32).astype(jnp.bfloat16)

    # Eval-mode BatchNorm1d(2) folded to per-channel scale/shift (channels = re/im).
    eps = 1e-5
    g0 = 1.0 + 0.1 * jax.random.normal(ks[4], (2,), jnp.float32)
    b0 = 0.05 * jax.random.normal(ks[5], (2,), jnp.float32)
    rm0 = jnp.zeros((2,), jnp.float32)
    rv0 = jnp.ones((2,), jnp.float32)
    g2 = 1.0 + 0.1 * jax.random.normal(ks[6], (2,), jnp.float32)
    b2 = 0.05 * jax.random.normal(ks[7], (2,), jnp.float32)
    rm2 = jnp.zeros((2,), jnp.float32)
    rv2 = jnp.ones((2,), jnp.float32)
    s0 = g0 / jnp.sqrt(rv0 + eps)
    sh0 = b0 - rm0 * s0
    s2 = g2 / jnp.sqrt(rv2 + eps)
    sh2 = b2 - rm2 * s2
    bn_params = jnp.array(
        [s0[0], sh0[0], s0[1], sh0[1], s2[0], sh2[0], s2[1], sh2[1]], jnp.float32
    )

    return {
        "tok_emb": tok_emb,
        "w_h2r": w_h2r,
        "b_h2r": b_h2r,
        "ent_emb": ent_emb,
        "bn_params": bn_params,
    }


if __name__ == "__main__":
    B = 2             # batch
    S = 8             # seq_len
    V = 64            # vocab (stand-in encoder)
    H = 128           # hidden_dim (BERT's 768 scaled down for the stand-in encoder)
    D = 64            # relation_dim
    N = 1024          # num_entities
    ED = 2 * D        # entity embedding dim (ComplEx)

    key = jax.random.PRNGKey(0)
    k_params, k_tok, k_head, k_tail = jax.random.split(key, 4)

    params = make_params(k_params, vocab=V, hidden_dim=H, relation_dim=D, num_entities=N)

    question_tokenized = jax.random.randint(k_tok, (B, S), 0, V, dtype=jnp.int32)
    attention_mask = jnp.concatenate(
        [jnp.ones((B, S - 2), jnp.int32), jnp.zeros((B, 2), jnp.int32)], axis=1
    )
    p_head = jax.random.randint(k_head, (B,), 0, N, dtype=jnp.int32)
    # Indicator answer set, stored/streamed as bf16 (exact for 0/1 values).
    p_tail = (jax.random.uniform(k_tail, (B, N)) < 0.03).astype(jnp.bfloat16)
    p_tail = p_tail.at[:, 0].set(1.0)   # guarantee non-empty answer sets

    loss = jax.jit(relation_extractor_forward)(
        params, question_tokenized, attention_mask, p_head, p_tail
    )
    jax.block_until_ready(loss)
    assert loss.shape == () and jnp.isfinite(loss)
    print("KERNEL_OK")
</pallas_src>

<mosaic_0001>
module attributes {stable_mosaic.version = 11 : i64} {
  func.func @prepare_kernel(%arg0: memref<8xf32, #tpu.memory_space<smem>>, %arg1: memref<2x128xf32, #tpu.memory_space<vmem>>, %arg2: memref<128x128xf32, #tpu.memory_space<vmem>>, %arg3: memref<1x128xf32, #tpu.memory_space<vmem>>, %arg4: memref<2x128xbf16, #tpu.memory_space<vmem>>, %arg5: memref<2x128xbf16, #tpu.memory_space<vmem>>) attributes {dimension_semantics = [], scalar_prefetch = 0 : i64, scratch_operands = 0 : i64, tpu.core_type = #tpu.core_type<tc>} {
    %c0 = arith.constant 0 : index
    %c0_0 = arith.constant 0 : index
    %0 = vector.load %arg1[%c0, %c0_0] : memref<2x128xf32, #tpu.memory_space<vmem>>, vector<2x128xf32>
    %c0_1 = arith.constant 0 : index
    %c0_2 = arith.constant 0 : index
    %1 = vector.load %arg2[%c0_1, %c0_2] : memref<128x128xf32, #tpu.memory_space<vmem>>, vector<128x128xf32>
    %cst = arith.constant dense<0.000000e+00> : vector<2x128xf32>
    %2 = tpu.matmul %0, %1, %cst {dimension_numbers = #tpu.dot_dimension_numbers<[1], [0], [0], [1], [0, 0, 1, 1], [], []>} : vector<2x128xf32>, vector<128x128xf32>, vector<2x128xf32> -> vector<2x128xf32>
    %c0_3 = arith.constant 0 : index
    %c0_4 = arith.constant 0 : index
    %3 = vector.load %arg3[%c0_3, %c0_4] : memref<1x128xf32, #tpu.memory_space<vmem>>, vector<1x128xf32>
    %4 = vector.broadcast %3 : vector<1x128xf32> to vector<2x128xf32>
    %5 = arith.addf %2, %4 : vector<2x128xf32>
    %6 = vector.extract_strided_slice %5 {offsets = [0, 0], sizes = [2, 64], strides = [1, 1]} : vector<2x128xf32> to vector<2x64xf32>
    %7 = vector.extract_strided_slice %5 {offsets = [0, 64], sizes = [2, 64], strides = [1, 1]} : vector<2x128xf32> to vector<2x64xf32>
    %c0_5 = arith.constant 0 : index
    %c0_6 = arith.constant 0 : index
    %8 = vector.load %arg4[%c0_5, %c0_6] : memref<2x128xbf16, #tpu.memory_space<vmem>>, vector<2x128xbf16>
    %9 = arith.extf %8 : vector<2x128xbf16> to vector<2x128xf32>
    %10 = vector.extract_strided_slice %9 {offsets = [0, 0], sizes = [2, 64], strides = [1, 1]} : vector<2x128xf32> to vector<2x64xf32>
    %c0_7 = arith.constant 0 : index
    %11 = memref.load %arg0[%c0_7] : memref<8xf32, #tpu.memory_space<smem>>
    %12 = vector.broadcast %11 : f32 to vector<2x64xf32>
    %13 = arith.mulf %10, %12 : vector<2x64xf32>
    %c1 = arith.constant 1 : index
    %14 = memref.load %arg0[%c1] : memref<8xf32, #tpu.memory_space<smem>>
    %15 = vector.broadcast %14 : f32 to vector<2x64xf32>
    %16 = arith.addf %13, %15 : vector<2x64xf32>
    %17 = vector.extract_strided_slice %9 {offsets = [0, 64], sizes = [2, 64], strides = [1, 1]} : vector<2x128xf32> to vector<2x64xf32>
    %c2 = arith.constant 2 : index
    %18 = memref.load %arg0[%c2] : memref<8xf32, #tpu.memory_space<smem>>
    %19 = vector.broadcast %18 : f32 to vector<2x64xf32>
    %20 = arith.mulf %17, %19 : vector<2x64xf32>
    %c3 = arith.constant 3 : index
    %21 = memref.load %arg0[%c3] : memref<8xf32, #tpu.memory_space<smem>>
    %22 = vector.broadcast %21 : f32 to vector<2x64xf32>
    %23 = arith.addf %20, %22 : vector<2x64xf32>
    %24 = arith.mulf %16, %6 : vector<2x64xf32>
    %25 = arith.mulf %23, %7 : vector<2x64xf32>
    %26 = arith.subf %24, %25 : vector<2x64xf32>
    %c4 = arith.constant 4 : index
    %27 = memref.load %arg0[%c4] : memref<8xf32, #tpu.memory_space<smem>>
    %28 = vector.broadcast %27 : f32 to vector<2x64xf32>
    %29 = arith.mulf %26, %28 : vector<2x64xf32>
    %c5 = arith.constant 5 : index
    %30 = memref.load %arg0[%c5] : memref<8xf32, #tpu.memory_space<smem>>
    %31 = vector.broadcast %30 : f32 to vector<2x64xf32>
    %32 = arith.addf %29, %31 : vector<2x64xf32>
    %33 = arith.mulf %16, %7 : vector<2x64xf32>
    %34 = arith.mulf %23, %6 : vector<2x64xf32>
    %35 = arith.addf %33, %34 : vector<2x64xf32>
    %c6 = arith.constant 6 : index
    %36 = memref.load %arg0[%c6] : memref<8xf32, #tpu.memory_space<smem>>
    %37 = vector.broadcast %36 : f32 to vector<2x64xf32>
    %38 = arith.mulf %35, %37 : vector<2x64xf32>
    %c7 = arith.constant 7 : index
    %39 = memref.load %arg0[%c7] : memref<8xf32, #tpu.memory_space<smem>>
    %40 = vector.broadcast %39 : f32 to vector<2x64xf32>
    %41 = arith.addf %38, %40 : vector<2x64xf32>
    %42 = tpu.concatenate %32, %41 in 1 : vector<2x64xf32>, vector<2x64xf32> -> vector<2x128xf32>
    %43 = arith.truncf %42 : vector<2x128xf32> to vector<2x128xbf16>
    %c0_8 = arith.constant 0 : index
    %c0_9 = arith.constant 0 : index
    %44 = vector.load %arg5[%c0_8, %c0_9] : memref<2x128xbf16, #tpu.memory_space<vmem>>, vector<2x128xbf16>
    tpu.vector_store %arg5[%c0_8, %c0_9], %43 {strides = array<i32>} : memref<2x128xbf16, #tpu.memory_space<vmem>>, vector<2x128xbf16>,
    return
  }
}

module attributes {stable_mosaic.version = 11 : i64} {
  func.func @score_stats_kernel(%arg0: i32, %arg1: memref<2x128xbf16, #tpu.memory_space<vmem>>, %arg2: memref<512x128xbf16, #tpu.memory_space<vmem>>, %arg3: memref<2x512xbf16, #tpu.memory_space<vmem>>, %arg4: memref<1x2x8xf32, #tpu.memory_space<vmem>>) attributes {dimension_semantics = [#tpu.dimension_semantics<parallel>], iteration_bounds = array<i64: 2>, scalar_prefetch = 0 : i64, scratch_operands = 0 : i64, tpu.core_type = #tpu.core_type<tc>, window_params = [{pipeline_mode = #tpu.pipeline_mode<synchronous>, transform_indices = @transform_0, window_bounds = array<i64: 2, 128>}, {transform_indices = @transform_1, window_bounds = array<i64: 512, 128>}, {transform_indices = @transform_2, window_bounds = array<i64: 2, 512>}, {transform_indices = @transform_3, window_bounds = array<i64: 1, 2, 8>}]} {
    %c0 = arith.constant 0 : index
    %c0_0 = arith.constant 0 : index
    %0 = vector.load %arg1[%c0, %c0_0] : memref<2x128xbf16, #tpu.memory_space<vmem>>, vector<2x128xbf16>
    %c0_1 = arith.constant 0 : index
    %c0_2 = arith.constant 0 : index
    %1 = vector.load %arg2[%c0_1, %c0_2] : memref<512x128xbf16, #tpu.memory_space<vmem>>, vector<512x128xbf16>
    %cst = arith.constant dense<0.000000e+00> : vector<2x512xf32>
    %2 = tpu.matmul %0, %1, %cst {dimension_numbers = #tpu.dot_dimension_numbers<[1], [1], [0], [0], [0, 0, 1, 0], [], []>} : vector<2x128xbf16>, vector<512x128xbf16>, vector<2x512xf32> -> vector<2x512xf32>
    %c0_3 = arith.constant 0 : index
    %c0_4 = arith.constant 0 : index
    %3 = vector.load %arg3[%c0_3, %c0_4] : memref<2x512xbf16, #tpu.memory_space<vmem>>, vector<2x512xbf16>
    %4 = arith.extf %3 : vector<2x512xbf16> to vector<2x512xf32>
    %cst_5 = arith.constant dense<0xFF800000> : vector<2xf32>
    %5 = vector.multi_reduction <maximumf>, %2, %cst_5 [1] : vector<2x512xf32> to vector<2xf32>
    %6 = vector.shape_cast %5 : vector<2xf32> to vector<2x1xf32>
    %7 = vector.broadcast %6 : vector<2x1xf32> to vector<2x512xf32>
    %8 = arith.subf %2, %7 : vector<2x512xf32>
    %9 = math.exp %8 : vector<2x512xf32>
    %cst_6 = arith.constant dense<0.000000e+00> : vector<2xf32>
    %10 = vector.multi_reduction <add>, %9, %cst_6 [1] : vector<2x512xf32> to vector<2xf32>
    %11 = vector.shape_cast %10 : vector<2xf32> to vector<2x1xf32>
    %12 = arith.mulf %4, %2 : vector<2x512xf32>
    %cst_7 = arith.constant dense<0.000000e+00> : vector<2xf32>
    %13 = vector.multi_reduction <add>, %12, %cst_7 [1] : vector<2x512xf32> to vector<2xf32>
    %14 = vector.shape_cast %13 : vector<2xf32> to vector<2x1xf32>
    %cst_8 = arith.constant 0.000000e+00 : f32
    %15 = vector.broadcast %cst_8 : f32 to vector<2x5xf32>
    %16 = tpu.concatenate %6, %11, %14, %15 in 1 : vector<2x1xf32>, vector<2x1xf32>, vector<2x1xf32>, vector<2x5xf32> -> vector<2x8xf32>
    %17 = vector.shape_cast %16 : vector<2x8xf32> to vector<1x2x8xf32>
    %c0_9 = arith.constant 0 : index
    %c0_10 = arith.constant 0 : index
    %c0_11 = arith.constant 0 : index
    %18 = vector.load %arg4[%c0_9, %c0_10, %c0_11] : memref<1x2x8xf32, #tpu.memory_space<vmem>>, vector<1x2x8xf32>
    tpu.vector_store %arg4[%c0_9, %c0_10, %c0_11], %17 {strides = array<i32>} : memref<1x2x8xf32, #tpu.memory_space<vmem>>, vector<1x2x8xf32>,
    return
  }
  func.func @transform_0(%arg0: i32) -> (i32, i32) {
    %c0_i32 = arith.constant 0 : i32
    %c0_i32_0 = arith.constant 0 : i32
    %c0_i32_1 = arith.constant 0 : i32
    return %c0_i32, %c0_i32_0 : i32, i32
  }
  func.func @transform_1(%arg0: i32) -> (i32, i32) {
    %c0_i32 = arith.constant 0 : i32
    %c0_i32_0 = arith.constant 0 : i32
    return %arg0, %c0_i32 : i32, i32
  }
  func.func @transform_2(%arg0: i32) -> (i32, i32) {
    %c0_i32 = arith.constant 0 : i32
    %c0_i32_0 = arith.constant 0 : i32
    return %c0_i32, %arg0 : i32, i32
  }
  func.func @transform_3(%arg0: i32) -> (i32, i32, i32) {
    %c0_i32 = arith.constant 0 : i32
    %c0_i32_0 = arith.constant 0 : i32
    %c0_i32_1 = arith.constant 0 : i32
    return %arg0, %c0_i32, %c0_i32_0 : i32, i32, i32
  }
}

</mosaic_0001>

<llo_original>
// kernel: relation_extractor_forward.2
$region0: #{relation_extractor_forward.2}
  #allocation0 [shape = 'u32[]', space=smem, size = 0x4, offset = 0x4, fixed_abs, tag = 'smem constant byte address 0x4 - core index']
  #allocation1 [shape = 'u32[144,128]{1,0:T(1,128)}', space=vmem, size = 0x12000, scoped, tag = 'internal scratch']
  %s0 = inlined_call_operand.vmem [shape: f32[8], index: 0, kind: input, shape index: {}]
  %s1 = inlined_call_operand.vmem [shape: f32[2,128], index: 1, kind: input, shape index: {}]
  %s2 = inlined_call_operand.vmem [shape: f32[128,128], index: 2, kind: input, shape index: {}]
  %s3 = inlined_call_operand.vmem [shape: f32[1,128], index: 3, kind: input, shape index: {}]
  %s4 = inlined_call_operand.vmem [shape: bf16[2,128], index: 4, kind: input, shape index: {}]
  %s5 = inlined_call_operand.vmem [shape: bf16[2,128], index: 5, kind: output, shape index: {}]
  %s6 = sld [smem:[#allocation0]]
  $region34: #{relation_extractor_forward.2} parent=0
    _
  %s8 = ssub.s32 1, %s6
  %s9 = scalar_select 0, %s8, %s6
  $region1: #{relation_extractor_forward.2} parent=0
    #allocation2 [shape = 'u8[512]{0}', space=smem, size = 0x200, scoped, tag = 'input window, operand 0, single buffered']
    #allocation3 [shape = 's32[1]{0}', space=sflag, size = 0x4, scoped, tag = 'scoped memory for relation_extractor_forward.2']
    %10 = vsyncpa [#allocation3], 0
    // Predicated region
    $region2: #{relation_extractor_forward.2} parent=1 // pred_check
      _
    $region3: #{relation_extractor_forward.2} parent=1 // pred_check_branch
      %12 = sbr.rel (0) target = $region5
    $region4: #{relation_extractor_forward.2} parent=1 // pred_region
      %s14 = ssub.s32 16, 16
      %15 = vsyncadd [#allocation3], %s14
      %s17 = sshll.u32 %s0, 4
      %s18 = int_to_ptr.vmem [resolvable:$true] %s17
      %20 = dma.vmem_to_smem %s18, 16, [#allocation2], [#allocation3]
    $region5: #{relation_extractor_forward.2} parent=1 // pred_fallthru
      _
    // Predicated region
    $region6: #{relation_extractor_forward.2} parent=1 // pred_check
      _
    $region7: #{relation_extractor_forward.2} parent=1 // pred_check_branch
      %22 = sbr.rel (0) target = $region9
    $region8: #{relation_extractor_forward.2} parent=1 // pred_region
      _
    $region9: #{relation_extractor_forward.2} parent=1 // pred_fallthru
      _
    // Predicated region
    $region10: #{relation_extractor_forward.2} parent=1 // pred_check
      _
    $region11: #{relation_extractor_forward.2} parent=1 // pred_check_branch
      %24 = sbr.rel (0) target = $region13
    $region12: #{relation_extractor_forward.2} parent=1 // pred_region
      _
    $region13: #{relation_extractor_forward.2} parent=1 // pred_fallthru
      _
    // Predicated region
    $region14: #{relation_extractor_forward.2} parent=1 // pred_check
      _
    $region15: #{relation_extractor_forward.2} parent=1 // pred_check_branch
      %26 = sbr.rel (0) target = $region17
    $region16: #{relation_extractor_forward.2} parent=1 // pred_region
      _
    $region17: #{relation_extractor_forward.2} parent=1 // pred_fallthru
      _
    // Predicated region
    $region18: #{relation_extractor_forward.2} parent=1 // pred_check
      _
    $region19: #{relation_extractor_forward.2} parent=1 // pred_check_branch
      %28 = sbr.rel (0) target = $region21
    $region20: #{relation_extractor_forward.2} parent=1 // pred_region
      _
    $region21: #{relation_extractor_forward.2} parent=1 // pred_fallthru
      _
    // Predicated region
    $region22: #{relation_extractor_forward.2} parent=1 // pred_check
      _
    $region23: #{relation_extractor_forward.2} parent=1 // pred_check_branch
      %30 = sbr.rel (0) target = $region25
    $region24: #{relation_extractor_forward.2} parent=1 // pred_region
      %31 = dma.done [#allocation3], 16
    $region25: #{relation_extractor_forward.2} parent=1 // pred_fallthru
      _
    %32 = sfence
    %v33 = vld [vmem:[%s1] sm:$0x3]
    %v34 = vld [vmem:[%s2] sm:$0xff]
    %v35 = vld [vmem:[%s2 + $0x8] sm:$0xff]
    %v36 = vld [vmem:[%s2 + $0x10] sm:$0xff]
    %v37 = vld [vmem:[%s2 + $0x18] sm:$0xff]
    %v38 = vld [vmem:[%s2 + $0x20] sm:$0xff]
    %v39 = vld [vmem:[%s2 + $0x28] sm:$0xff]
    %v40 = vld [vmem:[%s2 + $0x30] sm:$0xff]
    %v41 = vld [vmem:[%s2 + $0x38] sm:$0xff]
    %v42 = vld [vmem:[%s2 + $0x40] sm:$0xff]
    %v43 = vld [vmem:[%s2 + $0x48] sm:$0xff]
    %v44 = vld [vmem:[%s2 + $0x50] sm:$0xff]
    %v45 = vld [vmem:[%s2 + $0x58] sm:$0xff]
    %v46 = vld [vmem:[%s2 + $0x60] sm:$0xff]
    %v47 = vld [vmem:[%s2 + $0x68] sm:$0xff]
    %v48 = vld [vmem:[%s2 + $0x70] sm:$0xff]
    %v49 = vld [vmem:[%s2 + $0x78] sm:$0xff]
    %v50 = vld [vmem:[%s3] sm:$0x1]
    %v52 = vlaneseq
    %v53 = vshrl.u32 %v52, 7
    %v54 = vsub.s32 0, %v53
    %v55 = vrot.slane %v50, %v54
    %57 = vmatprep.subr.mxu0 0.0
    %58 = vmatpush1.msra.mxu0 %v34
    %59 = vmatprep.subr.mxu0 0.0
    %60 = vmatpush1.msra.mxu0 %v35
    %61 = vmatprep.subr.mxu0 0.0
    %62 = vmatpush1.msra.mxu0 %v36
    %63 = vmatprep.subr.mxu0 0.0
    %64 = vmatpush1.msra.mxu0 %v37
    %65 = vmatprep.subr.mxu0 0.0
    %66 = vmatpush1.msra.mxu0 %v38
    %67 = vmatprep.subr.mxu0 0.0
    %68 = vmatpush1.msra.mxu0 %v39
    %69 = vmatprep.subr.mxu0 0.0
    %70 = vmatpush1.msra.mxu0 %v40
    %71 = vmatprep.subr.mxu0 0.0
    %72 = vmatpush1.msra.mxu0 %v41
    %73 = vmatprep.subr.mxu0 0.0
    %74 = vmatpush1.msra.mxu0 %v42
    %75 = vmatprep.subr.mxu0 0.0
    %76 = vmatpush1.msra.mxu0 %v43
    %77 = vmatprep.subr.mxu0 0.0
    %78 = vmatpush1.msra.mxu0 %v44
    %79 = vmatprep.subr.mxu0 0.0
    %80 = vmatpush1.msra.mxu0 %v45
    %81 = vmatprep.subr.mxu0 0.0
    %82 = vmatpush1.msra.mxu0 %v46
    %83 = vmatprep.subr.mxu0 0.0
    %84 = vmatpush1.msra.mxu0 %v47
    %85 = vmatprep.subr.mxu0 0.0
    %86 = vmatpush1.msra.mxu0 %v48
    %87 = vmatprep.subr.mxu0 0.0
    %88 = vmatpush1.msra.mxu0 %v49
    %89 = vmatprep.subr.mxu0 0.0
    %90 = vmatpush1.msra.mxu0 0.0
    %91 = vmatprep.subr.mxu0 0.0
    %92 = vmatpush1.msra.mxu0 0.0
    %93 = vmatprep.subr.mxu0 0.0
    %94 = vmatpush1.msra.mxu0 0.0
    %95 = vmatprep.subr.mxu0 0.0
    %96 = vmatpush1.msra.mxu0 0.0
    %97 = vmatprep.subr.mxu0 0.0
    %98 = vmatpush1.msra.mxu0 0.0
    %99 = vmatprep.subr.mxu0 0.0
    %100 = vmatpush1.msra.mxu0 0.0
    %101 = vmatprep.subr.mxu0 0.0
    %102 = vmatpush1.msra.mxu0 0.0
    %103 = vmatprep.subr.mxu0 0.0
    %104 = vmatpush1.msra.mxu0 0.0
    %105 = vmatprep.subr.mxu0 0.0
    %106 = vmatpush1.msra.mxu0 0.0
    %107 = vmatprep.subr.mxu0 0.0
    %108 = vmatpush1.msra.mxu0 0.0
    %109 = vmatprep.subr.mxu0 0.0
    %110 = vmatpush1.msra.mxu0 0.0
    %111 = vmatprep.subr.mxu0 0.0
    %112 = vmatpush1.msra.mxu0 0.0
    %113 = vmatprep.subr.mxu0 0.0
    %114 = vmatpush1.msra.mxu0 0.0
    %115 = vmatprep.subr.mxu0 0.0
    %116 = vmatpush1.msra.mxu0 0.0
    %117 = vmatprep.subr.mxu0 0.0
    %118 = vmatpush1.msra.mxu0 0.0
    %119 = vmatprep.subr.mxu0 0.0
    %120 = vmatpush1.msra.mxu0 0.0
    %121 = vmatprep.mubr.f32.mxu0 0.0
    %122 = vmatmul.mubr.f32.gmra.mrb[0].mxu0 %v33
    %v123 = vpop.f32.mrb[0].mxu0
    %v124 = vadd.f32 %v55, %v123
    %v125 = vpop.f32.mrb[0].mxu0
    %126 = vdwg.mxu0
    %v127 = vld [vmem:[%s4] sm:$0x1]
    %v128 = vunpack.c.l.bf16 %v127
    %s129 = sld [smem:[#allocation2]]
    %v130 = vstv %s129
    %v131 = vmul.f32 %v128, %v130
    %s132 = sld [smem:[#allocation2 + $0x1]]
    %v133 = vstv %s132
    %v134 = vadd.f32 %v131, %v133
    %s135 = sld [smem:[#allocation2 + $0x2]]
    %v136 = vstv %s135
    %v137 = vmul.f32 %v128, %v136
    %s138 = sld [smem:[#allocation2 + $0x3]]
    %v139 = vstv %s138
    %v140 = vadd.f32 %v137, %v139
    %v141 = vmul.f32 %v134, %v124
    %v142 = vmul.f32 %v140, %v124
    %144 = vrot.lane.b32.xlu0 %v142, 64
    %v145 = vpop.permute.xlu0 %144
    %v147 = vsub.f32 %v141, %v145
    %s148 = sld [smem:[#allocation2 + $0x4]]
    %v149 = vstv %s148
    %v150 = vmul.f32 %v147, %v149
    %s151 = sld [smem:[#allocation2 + $0x5]]
    %v152 = vstv %s151
    %v153 = vadd.f32 %v150, %v152
    %v156 = vunpack.c.l.s4 1983009808
    %v157 = vunpack.c.0.s8 %v156
    %v158 = vlaneseq
    %v159 = vshrl.u32 %v158, 7
    %v160 = vsub.s32 %v157, %v159
    %v161 = vrot.slane %v124, %v160
    %162 = vrot.lane.b32.xlu0 %v161, 64
    %v163 = vpop.permute.xlu0 %162
    %v165 = vmul.f32 %v134, %v163
    %v166 = vmul.f32 %v140, %v163
    %168 = vrot.lane.b32.xlu0 %v166, 64
    %v169 = vpop.permute.xlu0 %168
    %v171 = vadd.f32 %v165, %v169
    %s172 = sld [smem:[#allocation2 + $0x6]]
    %v173 = vstv %s172
    %v174 = vmul.f32 %v171, %v173
    %s175 = sld [smem:[#allocation2 + $0x7]]
    %v176 = vstv %s175
    %v177 = vadd.f32 %v174, %v176
    %v180 = vunpack.c.l.s4 1983009808
    %v181 = vunpack.c.0.s8 %v180
    %v182 = vlaneseq
    %v183 = vshrl.u32 %v182, 7
    %v184 = vsub.s32 %v181, %v183
    %v185 = vrot.slane %v177, %v184
    %186 = vrot.lane.b32.xlu0 %v185, 64
    %v187 = vpop.permute.xlu0 %186
    %vm189 = vcmask 523264
    %v190 = vsel %vm189, %v153, %v187
    %v191 = vpack.c.bf16 %v190, %v190
    %192 = vst [vmem:[%s5] sm:$0x1] %v191
    // Predicated region
    $region26: #{relation_extractor_forward.2} parent=1 // pred_check
      _
    $region27: #{relation_extractor_forward.2} parent=1 // pred_check_branch
      %194 = sbr.rel (0) target = $region29
    $region28: #{relation_extractor_forward.2} parent=1 // pred_region
      _
    $region29: #{relation_extractor_forward.2} parent=1 // pred_fallthru
      _
    // Predicated region
    $region30: #{relation_extractor_forward.2} parent=1 // pred_check
      _
    $region31: #{relation_extractor_forward.2} parent=1 // pred_check_branch
      %196 = sbr.rel (0) target = $region33
    $region32: #{relation_extractor_forward.2} parent=1 // pred_region
      _
    $region33: #{relation_extractor_forward.2} parent=1 // pred_fallthru
      _
    %197 = vsyncpa [#allocation3], 1

// kernel: relation_extractor_forward.3
$region0: #{relation_extractor_forward.3}
  #allocation0 [shape = 'u32[]', space=smem, size = 0x4, offset = 0x4, fixed_abs, tag = 'smem constant byte address 0x4 - core index']
  #allocation1 [shape = 'u32[144,128]{1,0:T(1,128)}', space=vmem, size = 0x12000, scoped, tag = 'internal scratch']
  %s0 = inlined_call_operand.vmem [shape: bf16[2,128], index: 0, kind: input, shape index: {}]
  %s1 = inlined_call_operand.hbm [shape: bf16[1024,128], index: 1, kind: input, shape index: {}]
  %s2 = inlined_call_operand.vmem [shape: bf16[2,1024], index: 2, kind: input, shape index: {}]
  %s3 = inlined_call_operand.vmem [shape: f32[2,2,8], index: 3, kind: output, shape index: {}]
  %s4 = sld [smem:[#allocation0]]
  $region49: #{relation_extractor_forward.3} parent=0
    _
  %s6 = ssub.s32 1, %s4
  %s7 = scalar_select 0, %s6, %s4
  $region1: #{relation_extractor_forward.3} parent=0
    #allocation2 [shape = 'u8[262144]{0}', space=vmem, size = 0x40000, scoped, tag = 'input window, operand 1']
    #allocation3 [shape = 's32[2]{0}', space=sflag, size = 0x8, scoped, tag = 'scoped memory for relation_extractor_forward.3']
    %8 = vsyncpa [#allocation3], 0
    %s9 = scalar_lea.sflag [#allocation3], 1
    %10 = vsyncpa %s9, 0
    loop: start=0, step=1, limit=4
    $region2: #{relation_extractor_forward.3} parent=1 // loop_pre_header
      _
    $region3: #{relation_extractor_forward.3} parent=1 // loop_header
      %s12 = sphi 0, %s16
      %p13 = scmp.ge.s32.totalorder %s12, 4
      %s20 = sphi 0, %s20
      %s22 = sphi 0, %s20
      %s23 = sphi 0, %s22
      %s37 = sphi 0, %s23
      %s43 = sphi 0, %s45
      %s46 = sphi 0, %s43
      %s47 = sphi 0, %s46
      %s63 = sphi 0, %s47
      %s69 = sphi 0, %s71
      %s72 = sphi 0, %s69
      %s73 = sphi 0, %s72
      %s89 = sphi 0, %s73
      %s95 = sphi 0, %s97
      %s98 = sphi 0, %s95
      %s99 = sphi 0, %s98
      %s115 = sphi 0, %s99
    $region4: #{relation_extractor_forward.3} parent=1 // loop_header_branch
      %15 = sbr.rel (%p13) target = $region8
    $region5: #{relation_extractor_forward.3} parent=1 // loop_body
      %s17 = ssub.s32 %s12, 1
      %s18 = ssub.s32 %s12, 2
      %s19 = sadd.s32 %s12, 1
      %s21 = sadd.s32 %s20, 1
      %p24 = scmp.eq.s32.totalorder %s12, 1
      %p25 = scmp.ne.s32.totalorder %s20, %s22
      %p26 = scmp.eq.s32.totalorder %s12, 0
      %p27 = por %p25, %p26
      %p28 = scmp.ne.s32.totalorder %s20, %s22
      %p29 = scmp.eq.s32.totalorder %s17, 1
      %p30 = por %p28, %p29
      %p31 = scmp.ne.s32.totalorder %s22, %s23
      %p32 = scmp.eq.s32.totalorder %s17, 0
      %p33 = por %p31, %p32
      %p34 = scmp.ne.s32.totalorder %s22, %s23
      %p35 = scmp.eq.s32.totalorder %s18, 1
      %p36 = por %p34, %p35
      %p38 = scmp.ne.s32.totalorder %s23, %s37
      %p39 = scmp.eq.s32.totalorder %s18, 0
      %p40 = por %p38, %p39
      %s41 = ssub.s32 %s12, %s19
      %p42 = scmp.eq.s32.totalorder %s41, 0
      %s44 = sadd.s32 %s43, 1
      %s45 = scalar_select %p42, %s43, %s44
      %p48 = pneg %p42
      %p49 = scmp.eq.s32.totalorder %s12, 1
      %p50 = por %p48, %p49
      %p51 = scmp.ne.s32.totalorder %s43, %s46
      %p52 = scmp.eq.s32.totalorder %s12, 0
      %p53 = por %p51, %p52
      %p54 = scmp.ne.s32.totalorder %s43, %s46
      %p55 = scmp.eq.s32.totalorder %s17, 1
      %p56 = por %p54, %p55
      %p57 = scmp.ne.s32.totalorder %s46, %s47
      %p58 = scmp.eq.s32.totalorder %s17, 0
      %p59 = por %p57, %p58
      %p60 = scmp.ne.s32.totalorder %s46, %s47
      %p61 = scmp.eq.s32.totalorder %s18, 1
      %p62 = por %p60, %p61
      %p64 = scmp.ne.s32.totalorder %s47, %s63
      %p65 = scmp.eq.s32.totalorder %s18, 0
      %p66 = por %p64, %p65
      %s67 = ssub.s32 %s12, %s19
      %p68 = scmp.eq.s32.totalorder %s67, 0
      %s70 = sadd.s32 %s69, 1
      %s71 = scalar_select %p68, %s69, %s70
      %p74 = pneg %p68
      %p75 = scmp.eq.s32.totalorder %s12, 1
      %p76 = por %p74, %p75
      %p77 = scmp.ne.s32.totalorder %s69, %s72
      %p78 = scmp.eq.s32.totalorder %s12, 0
      %p79 = por %p77, %p78
      %p80 = scmp.ne.s32.totalorder %s69, %s72
      %p81 = scmp.eq.s32.totalorder %s17, 1
      %p82 = por %p80, %p81
      %p83 = scmp.ne.s32.totalorder %s72, %s73
      %p84 = scmp.eq.s32.totalorder %s17, 0
      %p85 = por %p83, %p84
      %p86 = scmp.ne.s32.totalorder %s72, %s73
      %p87 = scmp.eq.s32.totalorder %s18, 1
      %p88 = por %p86, %p87
      %p90 = scmp.ne.s32.totalorder %s73, %s89
      %p91 = scmp.eq.s32.totalorder %s18, 0
      %p92 = por %p90, %p91
      %s93 = ssub.s32 %s12, %s19
      %p94 = scmp.eq.s32.totalorder %s93, 0
      %s96 = sadd.s32 %s95, 1
      %s97 = scalar_select %p94, %s95, %s96
      %p100 = pneg %p94
      %p101 = scmp.eq.s32.totalorder %s12, 1
      %p102 = por %p100, %p101
      %p103 = scmp.ne.s32.totalorder %s95, %s98
      %p104 = scmp.eq.s32.totalorder %s12, 0
      %p105 = por %p103, %p104
      %p106 = scmp.ne.s32.totalorder %s95, %s98
      %p107 = scmp.eq.s32.totalorder %s17, 1
      %p108 = por %p106, %p107
      %p109 = scmp.ne.s32.totalorder %s98, %s99
      %p110 = scmp.eq.s32.totalorder %s17, 0
      %p111 = por %p109, %p110
      %p112 = scmp.ne.s32.totalorder %s98, %s99
      %p113 = scmp.eq.s32.totalorder %s18, 1
      %p114 = por %p112, %p113
      %p116 = scmp.ne.s32.totalorder %s99, %s115
      %p117 = scmp.eq.s32.totalorder %s18, 0
      %p118 = por %p116, %p117
      %p119 = scmp.le.s32.totalorder 1, %s12
      %p120 = scmp.lt.s32.totalorder %s12, 3
      %p121 = pnand %p119, %p120
      %p122 = pneg %p121
      // Predicated region
      $region9: #{relation_extractor_forward.3} parent=5 // pred_check
        _
      $region10: #{relation_extractor_forward.3} parent=5 // pred_check_branch
        %124 = sbr.rel (%p121) target = $region12
      $region11: #{relation_extractor_forward.3} parent=5 // pred_region
        %s125 = ssub.s32 %s12, 1
        // Predicated region
        $region13: #{relation_extractor_forward.3} parent=11 // pred_check
          %p126 = pneg %p33
        $region14: #{relation_extractor_forward.3} parent=11 // pred_check_branch
          %128 = sbr.rel (%p126) target = $region16
        $region15: #{relation_extractor_forward.3} parent=11 // pred_region
          _
        $region16: #{relation_extractor_forward.3} parent=11 // pred_fallthru
          _
      $region12: #{relation_extractor_forward.3} parent=5 // pred_fallthru
        _
      %p129 = scmp.lt.s32.totalorder %s12, 2
      // Predicated region
      $region17: #{relation_extractor_forward.3} parent=5 // pred_check
        %p130 = pneg %p129
      $region18: #{relation_extractor_forward.3} parent=5 // pred_check_branch
        %132 = sbr.rel (%p130) target = $region20
      $region19: #{relation_extractor_forward.3} parent=5 // pred_region
        // Predicated region
        $region21: #{relation_extractor_forward.3} parent=19 // pred_check
          %p133 = pneg %p53
        $region22: #{relation_extractor_forward.3} parent=19 // pred_check_branch
          %135 = sbr.rel (%p133) target = $region24
        $region23: #{relation_extractor_forward.3} parent=19 // pred_region
          %s136 = sand.u32 %s43, 1
          %s137 = scalar_lea.sflag [#allocation3], %s136
          %s138 = sand.u32 %s43, 1
          %s139 = smul.addr %s138, 256
          %s140 = scalar_lea.vmem [#allocation2], %s139
          %s141 = smul.u32 64, %s12
          %s143 = ssub.s32 4096, 4096
          %144 = vsyncadd %s137, %s143
          %s145 = smul.addr %s141, 64
          %s146 = scalar_lea.hbm %s1, %s145
          %s147 = sshll.u32 %s140, 4
          %s148 = int_to_ptr.vmem [resolvable:$true] %s147
          %153 = dma.hbm_to_vmem [thread:$0]  %s146, 4096, %s148, %s137, 64, 64, 4
        $region24: #{relation_extractor_forward.3} parent=19 // pred_fallthru
          _
        // Predicated region
        $region25: #{relation_extractor_forward.3} parent=19 // pred_check
          %p154 = pneg %p79
        $region26: #{relation_extractor_forward.3} parent=19 // pred_check_branch
          %156 = sbr.rel (%p154) target = $region28
        $region27: #{relation_extractor_forward.3} parent=19 // pred_region
          %s157 = smul.u32 4, %s12
          %p158 = scmp.lt.s32.totalorder %s157, 7
          %s159 = scalar_select %p158, %s157, 7
          %s160 = scalar_lea.vmem %s2, %s159
          %s161 = smul.u32 4, %s12
        $region28: #{relation_extractor_forward.3} parent=19 // pred_fallthru
          _
      $region20: #{relation_extractor_forward.3} parent=5 // pred_fallthru
        _
      %p162 = scmp.le.s32.totalorder 1, %s12
      %p163 = scmp.lt.s32.totalorder %s12, 3
      %p164 = pnand %p162, %p163
      %p165 = pneg %p164
      // Predicated region
      $region29: #{relation_extractor_forward.3} parent=5 // pred_check
        _
      $region30: #{relation_extractor_forward.3} parent=5 // pred_check_branch
        %167 = sbr.rel (%p164) target = $region32
      $region31: #{relation_extractor_forward.3} parent=5 // pred_region
        %s168 = ssub.s32 %s12, 1
        %s169 = sand.u32 %s46, 1
        %s170 = scalar_lea.sflag [#allocation3], %s169
        %s171 = sand.u32 %s46, 1
        %s172 = smul.addr %s171, 256
        %s173 = scalar_lea.vmem [#allocation2], %s172
        // Predicated region
        $region33: #{relation_extractor_forward.3} parent=31 // pred_check
          %p174 = pneg %p59
        $region34: #{relation_extractor_forward.3} parent=31 // pred_check_branch
          %176 = sbr.rel (%p174) target = $region36
        $region35: #{relation_extractor_forward.3} parent=31 // pred_region
          %177 = dma.done %s170, 4096
        $region36: #{relation_extractor_forward.3} parent=31 // pred_fallthru
          _
        %p178 = pneg %p33
        %p179 = pneg %p30
        %s180 = sand.u32 %s46, 1
        %s181 = scalar_lea.sflag [#allocation3], %s180
        %s182 = sand.u32 %s46, 1
        %s183 = smul.addr %s182, 256
        %s184 = scalar_lea.vmem [#allocation2], %s183
        %p185 = pneg %p59
        %p186 = pneg %p56
        %s187 = smul.u32 4, %s17
        %p188 = scmp.lt.s32.totalorder %s187, 7
        %s189 = scalar_select %p188, %s187, 7
        %s190 = scalar_lea.vmem %s2, %s189
        %p191 = pneg %p85
        %p192 = pneg %p82
        %p193 = pneg %p111
        %p194 = pneg %p108
        %p195 = scmp.lt.s32.totalorder %s17, 1
        %s196 = scalar_select %p195, %s17, 1
        %s197 = smul.addr %s196, 2
        %s198 = scalar_lea.vmem %s3, %s197
        %s199 = smul.u32 64, %s17
        %s200 = smul.u32 4, %s17
        %p201 = scmp.lt.s32.totalorder %s200, 7
        %s202 = scalar_select %p201, %s200, 7
        %s203 = scalar_lea.vmem %s2, %s202
        %s204 = smul.u32 4, %s17
        %p205 = scmp.lt.s32.totalorder %s17, 1
        %s206 = scalar_select %p205, %s17, 1
        %s207 = smul.addr %s206, 2
        %s208 = scalar_lea.vmem %s3, %s207
        %v210 = vld [vmem:[%s0] sm:$0x1]
        %v211 = vld [vmem:[%s173] sm:$0xf]
        %v212 = vld [vmem:[%s173 + $0x4] sm:$0xf]
        %v213 = vld [vmem:[%s173 + $0x8] sm:$0xf]
        %v214 = vld [vmem:[%s173 + $0xc] sm:$0xf]
        %v215 = vld [vmem:[%s173 + $0x10] sm:$0xf]
        %v216 = vld [vmem:[%s173 + $0x14] sm:$0xf]
        %v217 = vld [vmem:[%s173 + $0x18] sm:$0xf]
        %v218 = vld [vmem:[%s173 + $0x1c] sm:$0xf]
        %v219 = vld [vmem:[%s173 + $0x20] sm:$0xf]
        %v220 = vld [vmem:[%s173 + $0x24] sm:$0xf]
        %v221 = vld [vmem:[%s173 + $0x28] sm:$0xf]
        %v222 = vld [vmem:[%s173 + $0x2c] sm:$0xf]
        %v223 = vld [vmem:[%s173 + $0x30] sm:$0xf]
        %v224 = vld [vmem:[%s173 + $0x34] sm:$0xf]
        %v225 = vld [vmem:[%s173 + $0x38] sm:$0xf]
        %v226 = vld [vmem:[%s173 + $0x3c] sm:$0xf]
        %v227 = vld [vmem:[%s173 + $0x40] sm:$0xf]
        %v228 = vld [vmem:[%s173 + $0x44] sm:$0xf]
        %v229 = vld [vmem:[%s173 + $0x48] sm:$0xf]
        %v230 = vld [vmem:[%s173 + $0x4c] sm:$0xf]
        %v231 = vld [vmem:[%s173 + $0x50] sm:$0xf]
        %v232 = vld [vmem:[%s173 + $0x54] sm:$0xf]
        %v233 = vld [vmem:[%s173 + $0x58] sm:$0xf]
        %v234 = vld [vmem:[%s173 + $0x5c] sm:$0xf]
        %v235 = vld [vmem:[%s173 + $0x60] sm:$0xf]
        %v236 = vld [vmem:[%s173 + $0x64] sm:$0xf]
        %v237 = vld [vmem:[%s173 + $0x68] sm:$0xf]
        %v238 = vld [vmem:[%s173 + $0x6c] sm:$0xf]
        %v239 = vld [vmem:[%s173 + $0x70] sm:$0xf]
        %v240 = vld [vmem:[%s173 + $0x74] sm:$0xf]
        %v241 = vld [vmem:[%s173 + $0x78] sm:$0xf]
        %v242 = vld [vmem:[%s173 + $0x7c] sm:$0xf]
        %v243 = vld [vmem:[%s173 + $0x80] sm:$0xf]
        %v244 = vld [vmem:[%s173 + $0x84] sm:$0xf]
        %v245 = vld [vmem:[%s173 + $0x88] sm:$0xf]
        %v246 = vld [vmem:[%s173 + $0x8c] sm:$0xf]
        %v247 = vld [vmem:[%s173 + $0x90] sm:$0xf]
        %v248 = vld [vmem:[%s173 + $0x94] sm:$0xf]
        %v249 = vld [vmem:[%s173 + $0x98] sm:$0xf]
        %v250 = vld [vmem:[%s173 + $0x9c] sm:$0xf]
        %v251 = vld [vmem:[%s173 + $0xa0] sm:$0xf]
        %v252 = vld [vmem:[%s173 + $0xa4] sm:$0xf]
        %v253 = vld [vmem:[%s173 + $0xa8] sm:$0xf]
        %v254 = vld [vmem:[%s173 + $0xac] sm:$0xf]
        %v255 = vld [vmem:[%s173 + $0xb0] sm:$0xf]
        %v256 = vld [vmem:[%s173 + $0xb4] sm:$0xf]
        %v257 = vld [vmem:[%s173 + $0xb8] sm:$0xf]
        %v258 = vld [vmem:[%s173 + $0xbc] sm:$0xf]
        %v259 = vld [vmem:[%s173 + $0xc0] sm:$0xf]
        %v260 = vld [vmem:[%s173 + $0xc4] sm:$0xf]
        %v261 = vld [vmem:[%s173 + $0xc8] sm:$0xf]
        %v262 = vld [vmem:[%s173 + $0xcc] sm:$0xf]
        %v263 = vld [vmem:[%s173 + $0xd0] sm:$0xf]
        %v264 = vld [vmem:[%s173 + $0xd4] sm:$0xf]
        %v265 = vld [vmem:[%s173 + $0xd8] sm:$0xf]
        %v266 = vld [vmem:[%s173 + $0xdc] sm:$0xf]
        %v267 = vld [vmem:[%s173 + $0xe0] sm:$0xf]
        %v268 = vld [vmem:[%s173 + $0xe4] sm:$0xf]
        %v269 = vld [vmem:[%s173 + $0xe8] sm:$0xf]
        %v270 = vld [vmem:[%s173 + $0xec] sm:$0xf]
        %v271 = vld [vmem:[%s173 + $0xf0] sm:$0xf]
        %v272 = vld [vmem:[%s173 + $0xf4] sm:$0xf]
        %v273 = vld [vmem:[%s173 + $0xf8] sm:$0xf]
        %v274 = vld [vmem:[%s173 + $0xfc] sm:$0xf]
        %v339 = vunpack.c.l.b16 %v211
        %v340 = vunpack.c.l.b16 %v212
        %v341 = vunpack.c.l.b16 %v213
        %v342 = vunpack.c.l.b16 %v214
        %v343 = vunpack.c.l.b16 %v215
        %v344 = vunpack.c.l.b16 %v216
        %v345 = vunpack.c.l.b16 %v217
        %v346 = vunpack.c.l.b16 %v218
        %v347 = vunpack.c.l.b16 %v219
        %v348 = vunpack.c.l.b16 %v220
        %v349 = vunpack.c.l.b16 %v221
        %v350 = vunpack.c.l.b16 %v222
        %v351 = vunpack.c.l.b16 %v223
        %v352 = vunpack.c.l.b16 %v224
        %v353 = vunpack.c.l.b16 %v225
        %v354 = vunpack.c.l.b16 %v226
        %v355 = vunpack.c.l.b16 %v227
        %v356 = vunpack.c.l.b16 %v228
        %v357 = vunpack.c.l.b16 %v229
        %v358 = vunpack.c.l.b16 %v230
        %v359 = vunpack.c.l.b16 %v231
        %v360 = vunpack.c.l.b16 %v232
        %v361 = vunpack.c.l.b16 %v233
        %v362 = vunpack.c.l.b16 %v234
        %v363 = vunpack.c.l.b16 %v235
        %v364 = vunpack.c.l.b16 %v236
        %v365 = vunpack.c.l.b16 %v237
        %v366 = vunpack.c.l.b16 %v238
        %v367 = vunpack.c.l.b16 %v239
        %v368 = vunpack.c.l.b16 %v240
        %v369 = vunpack.c.l.b16 %v241
        %v370 = vunpack.c.l.b16 %v242
        %v371 = vunpack.c.l.b16 %v243
        %v372 = vunpack.c.l.b16 %v244
        %v373 = vunpack.c.l.b16 %v245
        %v374 = vunpack.c.l.b16 %v246
        %v375 = vunpack.c.l.b16 %v247
        %v376 = vunpack.c.l.b16 %v248
        %v377 = vunpack.c.l.b16 %v249
        %v378 = vunpack.c.l.b16 %v250
        %v379 = vunpack.c.l.b16 %v251
        %v380 = vunpack.c.l.b16 %v252
        %v381 = vunpack.c.l.b16 %v253
        %v382 = vunpack.c.l.b16 %v254
        %v383 = vunpack.c.l.b16 %v255
        %v384 = vunpack.c.l.b16 %v256
        %v385 = vunpack.c.l.b16 %v257
        %v386 = vunpack.c.l.b16 %v258
        %v387 = vunpack.c.l.b16 %v259
        %v388 = vunpack.c.l.b16 %v260
        %v389 = vunpack.c.l.b16 %v261
        %v390 = vunpack.c.l.b16 %v262
        %v391 = vunpack.c.l.b16 %v263
        %v392 = vunpack.c.l.b16 %v264
        %v393 = vunpack.c.l.b16 %v265
        %v394 = vunpack.c.l.b16 %v266
        %v395 = vunpack.c.l.b16 %v267
        %v396 = vunpack.c.l.b16 %v268
        %v397 = vunpack.c.l.b16 %v269
        %v398 = vunpack.c.l.b16 %v270
        %v399 = vunpack.c.l.b16 %v271
        %v400 = vunpack.c.l.b16 %v272
        %v401 = vunpack.c.l.b16 %v273
        %v402 = vunpack.c.l.b16 %v274
        %v403 = vpack.c.b16 %v340, %v339
        %v404 = vpack.c.b16 %v342, %v341
        %v405 = vpack.c.b16 %v344, %v343
        %v406 = vpack.c.b16 %v346, %v345
        %v407 = vpack.c.b16 %v348, %v347
        %v408 = vpack.c.b16 %v350, %v349
        %v409 = vpack.c.b16 %v352, %v351
        %v410 = vpack.c.b16 %v354, %v353
        %v411 = vpack.c.b16 %v356, %v355
        %v412 = vpack.c.b16 %v358, %v357
        %v413 = vpack.c.b16 %v360, %v359
        %v414 = vpack.c.b16 %v362, %v361
        %v415 = vpack.c.b16 %v364, %v363
        %v416 = vpack.c.b16 %v366, %v365
        %v417 = vpack.c.b16 %v368, %v367
        %v418 = vpack.c.b16 %v370, %v369
        %v419 = vpack.c.b16 %v372, %v371
        %v420 = vpack.c.b16 %v374, %v373
        %v421 = vpack.c.b16 %v376, %v375
        %v422 = vpack.c.b16 %v378, %v377
        %v423 = vpack.c.b16 %v380, %v379
        %v424 = vpack.c.b16 %v382, %v381
        %v425 = vpack.c.b16 %v384, %v383
        %v426 = vpack.c.b16 %v386, %v385
        %v427 = vpack.c.b16 %v388, %v387
        %v428 = vpack.c.b16 %v390, %v389
        %v429 = vpack.c.b16 %v392, %v391
        %v430 = vpack.c.b16 %v394, %v393
        %v431 = vpack.c.b16 %v396, %v395
        %v432 = vpack.c.b16 %v398, %v397
        %v433 = vpack.c.b16 %v400, %v399
        %v434 = vpack.c.b16 %v402, %v401
        %467 = vmatprep.subr.bf16.mxu0 0
        %468 = vmatpush1.bf16.xpose.msra.mxu0 %v403
        %469 = vmatprep.subr.bf16.mxu0 0
        %470 = vmatpush1.bf16.xpose.msra.mxu0 %v404
        %471 = vmatprep.subr.bf16.mxu0 0
        %472 = vmatpush1.bf16.xpose.msra.mxu0 %v405
        %473 = vmatprep.subr.bf16.mxu0 0
        %474 = vmatpush1.bf16.xpose.msra.mxu0 %v406
        %475 = vmatprep.subr.bf16.mxu0 0
        %476 = vmatpush1.bf16.xpose.msra.mxu0 %v407
        %477 = vmatprep.subr.bf16.mxu0 0
        %478 = vmatpush1.bf16.xpose.msra.mxu0 %v408
        %479 = vmatprep.subr.bf16.mxu0 0
        %480 = vmatpush1.bf16.xpose.msra.mxu0 %v409
        %481 = vmatprep.subr.bf16.mxu0 0
        %482 = vmatpush1.bf16.xpose.msra.mxu0 %v410
        %483 = vmatprep.subr.bf16.mxu0 0
        %484 = vmatpush1.bf16.xpose.msra.mxu0 %v411
        %485 = vmatprep.subr.bf16.mxu0 0
        %486 = vmatpush1.bf16.xpose.msra.mxu0 %v412
        %487 = vmatprep.subr.bf16.mxu0 0
        %488 = vmatpush1.bf16.xpose.msra.mxu0 %v413
        %489 = vmatprep.subr.bf16.mxu0 0
        %490 = vmatpush1.bf16.xpose.msra.mxu0 %v414
        %491 = vmatprep.subr.bf16.mxu0 0
        %492 = vmatpush1.bf16.xpose.msra.mxu0 %v415
        %493 = vmatprep.subr.bf16.mxu0 0
        %494 = vmatpush1.bf16.xpose.msra.mxu0 %v416
        %495 = vmatprep.subr.bf16.mxu0 0
        %496 = vmatpush1.bf16.xpose.msra.mxu0 %v417
        %497 = vmatprep.subr.bf16.mxu0 0
        %498 = vmatpush1.bf16.xpose.msra.mxu0 %v418
        %499 = vmatprep.mubr.bf16.mxu0 0
        %500 = vmatmul.mubr.bf16.gmra.mrb[0].mxu0 %v210
        %v501 = vpop.f32.mrb[0].mxu0
        %v502 = vadd.f32 0.0, %v501
        %v503 = vpop.f32.mrb[0].mxu0
        %v504 = vadd.f32 0.0, %v503
        %v505 = vpop.f32.mrb[0].mxu0
        %v506 = vpop.f32.mrb[0].mxu0
        %507 = vdwg.mxu0
        %508 = vmatprep.subr.bf16.mxu0 0
        %509 = vmatpush1.bf16.xpose.msra.mxu0 %v419
        %510 = vmatprep.subr.bf16.mxu0 0
        %511 = vmatpush1.bf16.xpose.msra.mxu0 %v420
        %512 = vmatprep.subr.bf16.mxu0 0
        %513 = vmatpush1.bf16.xpose.msra.mxu0 %v421
        %514 = vmatprep.subr.bf16.mxu0 0
        %515 = vmatpush1.bf16.xpose.msra.mxu0 %v422
        %516 = vmatprep.subr.bf16.mxu0 0
        %517 = vmatpush1.bf16.xpose.msra.mxu0 %v423
        %518 = vmatprep.subr.bf16.mxu0 0
        %519 = vmatpush1.bf16.xpose.msra.mxu0 %v424
        %520 = vmatprep.subr.bf16.mxu0 0
        %521 = vmatpush1.bf16.xpose.msra.mxu0 %v425
        %522 = vmatprep.subr.bf16.mxu0 0
        %523 = vmatpush1.bf16.xpose.msra.mxu0 %v426
        %524 = vmatprep.subr.bf16.mxu0 0
        %525 = vmatpush1.bf16.xpose.msra.mxu0 %v427
        %526 = vmatprep.subr.bf16.mxu0 0
        %527 = vmatpush1.bf16.xpose.msra.mxu0 %v428
        %528 = vmatprep.subr.bf16.mxu0 0
        %529 = vmatpush1.bf16.xpose.msra.mxu0 %v429
        %530 = vmatprep.subr.bf16.mxu0 0
        %531 = vmatpush1.bf16.xpose.msra.mxu0 %v430
        %532 = vmatprep.subr.bf16.mxu0 0
        %533 = vmatpush1.bf16.xpose.msra.mxu0 %v431
        %534 = vmatprep.subr.bf16.mxu0 0
        %535 = vmatpush1.bf16.xpose.msra.mxu0 %v432
        %536 = vmatprep.subr.bf16.mxu0 0
        %537 = vmatpush1.bf16.xpose.msra.mxu0 %v433
        %538 = vmatprep.subr.bf16.mxu0 0
        %539 = vmatpush1.bf16.xpose.msra.mxu0 %v434
        %540 = vmatprep.mubr.bf16.mxu0 0
        %541 = vmatmul.mubr.bf16.gmra.mrb[0].mxu0 %v210
        %v542 = vpop.f32.mrb[0].mxu0
        %v543 = vadd.f32 0.0, %v542
        %v544 = vpop.f32.mrb[0].mxu0
        %v545 = vadd.f32 0.0, %v544
        %v546 = vpop.f32.mrb[0].mxu0
        %v547 = vpop.f32.mrb[0].mxu0
        %548 = vdwg.mxu0
        %v549 = vld [vmem:[%s203] sm:$0xf]
        %v550 = vunpack.c.l.bf16 %v549
        %vm551 = vcmask 1041408
        %v552 = vsel %vm551, %v502, -inf
        %v553 = vsel %vm551, %v504, -inf
        %v554 = vsel %vm551, %v543, -inf
        %v555 = vsel %vm551, %v545, -inf
        %v556 = vmax.f32 %v552, %v553
        %v557 = vmax.f32 %v554, %v555
        %v558 = vmax.f32 %v556, %v557
        %559 = vmax.xlane.f32.xlu0 %v558
        %v560 = vpop.xlane.xlu0 %559
        %v561 = vsub.f32 %v502, %v560
        %v562 = vsub.f32 %v504, %v560
        %v563 = vsub.f32 %v543, %v560
        %v564 = vsub.f32 %v545, %v560
        %v565 = vmul.f32 %v561, 1.442695
        %v566 = vpow.pop %v565
        %v567 = vmul.f32 %v562, 1.442695
        %v568 = vpow.pop %v567
        %v569 = vmul.f32 %v563, 1.442695
        %v570 = vpow.pop %v569
        %v571 = vmul.f32 %v564, 1.442695
        %v572 = vpow.pop %v571
        %v573 = vsel %vm551, %v566, 0.0
        %v574 = vsel %vm551, %v568, 0.0
        %v575 = vadd.f32 %v573, %v574
        %v576 = vsel %vm551, %v570, 0.0
        %v577 = vadd.f32 %v575, %v576
        %v578 = vsel %vm551, %v572, 0.0
        %v579 = vadd.f32 %v577, %v578
        %580 = vadd.xlane.f32.xlu0 %v579
        %v581 = vpop.xlane.xlu0 %580
        %v586 = vcombine.low %v502, %v504
        %v587 = vcombine.low %v543, %v545
        %v589 = vunpack.c.l.s4 1983009808
        %v590 = vunpack.c.0.s8 %v589
        %v591 = vlaneseq
        %v592 = vshrl.u32 %v591, 7
        %v593 = vsub.s32 %v590, %v592
        %v594 = vrot.slane %v586, %v593
        %v596 = vunpack.c.l.s4 1983009808
        %v597 = vunpack.c.0.s8 %v596
        %v598 = vlaneseq
        %v599 = vshrl.u32 %v598, 7
        %v600 = vsub.s32 %v597, %v599
        %v601 = vrot.slane %v587, %v600
        %v602 = vcombine.low %v594, %v601
        %v604 = vmul.f32 %v550, %v602
        %v606 = vcombine.high %v604, %v604
        %v608 = vunpack.c.l.s4 1983009808
        %v609 = vunpack.c.0.s8 %v608
        %v610 = vlaneseq
        %v611 = vshrl.u32 %v610, 7
        %v612 = vsub.s32 %v609, %v611
        %v613 = vrot.slane %v604, %v612
        %v615 = vunpack.c.l.s4 1983009808
        %v616 = vunpack.c.0.s8 %v615
        %v617 = vlaneseq
        %v618 = vshrl.u32 %v617, 7
        %v619 = vsub.s32 %v616, %v618
        %v620 = vrot.slane %v606, %v619
        %v621 = vcombine.high %v613, %v613
        %v622 = vcombine.high %v620, %v620
        %v627 = vsel %vm551, %v613, 0.0
        %v628 = vsel %vm551, %v621, 0.0
        %v629 = vadd.f32 %v627, %v628
        %v630 = vsel %vm551, %v620, 0.0
        %v631 = vadd.f32 %v629, %v630
        %v632 = vsel %vm551, %v622, 0.0
        %v633 = vadd.f32 %v631, %v632
        %634 = vadd.xlane.f32.xlu0 %v633
        %v635 = vpop.xlane.xlu0 %634
        %vm636 = vcmask 7168
        %v637 = vsel %vm636, %v560, %v581
        %vm638 = vcmask 15360
        %v639 = vsel %vm638, %v637, %v635
        %vm640 = vcmask 23552
        %v641 = vsel %vm640, %v639, 0.0
        %vm642 = vcmask 58368
        %643 = vst.msk [vmem:[%s208] sm:$0x3] %vm642, %v641
        %p644 = scmp.lt.s32.totalorder %s17, 1
        %s645 = scalar_select %p644, %s17, 1
        %s646 = smul.addr %s645, 2
        %s647 = scalar_lea.vmem %s3, %s646
        // Predicated region
        $region37: #{relation_extractor_forward.3} parent=31 // pred_check
          %p648 = pneg %p108
        $region38: #{relation_extractor_forward.3} parent=31 // pred_check_branch
          %650 = sbr.rel (%p648) target = $region40
        $region39: #{relation_extractor_forward.3} parent=31 // pred_region
          _
        $region40: #{relation_extractor_forward.3} parent=31 // pred_fallthru
          _
      $region32: #{relation_extractor_forward.3} parent=5 // pred_fallthru
        _
      %p651 = scmp.le.s32.totalorder 2, %s12
      // Predicated region
      $region41: #{relation_extractor_forward.3} parent=5 // pred_check
        %p652 = pneg %p651
      $region42: #{relation_extractor_forward.3} parent=5 // pred_check_branch
        %654 = sbr.rel (%p652) target = $region44
      $region43: #{relation_extractor_forward.3} parent=5 // pred_region
        %s655 = ssub.s32 %s12, 2
        // Predicated region
        $region45: #{relation_extractor_forward.3} parent=43 // pred_check
          %p656 = pneg %p114
        $region46: #{relation_extractor_forward.3} parent=43 // pred_check_branch
          %658 = sbr.rel (%p656) target = $region48
        $region47: #{relation_extractor_forward.3} parent=43 // pred_region
          %p659 = scmp.lt.s32.totalorder %s18, 1
          %s660 = scalar_select %p659, %s18, 1
          %s661 = smul.addr %s660, 2
          %s662 = scalar_lea.vmem %s3, %s661
        $region48: #{relation_extractor_forward.3} parent=43 // pred_fallthru
          _
      $region44: #{relation_extractor_forward.3} parent=5 // pred_fallthru
        _
    $region6: #{relation_extractor_forward.3} parent=1 // loop_footer
      %s16 = sadd.s32 1, %s12
    $region7: #{relation_extractor_forward.3} parent=1 // loop_footer_branch
      %11 = sbr.rel target = $region3
    $region8: #{relation_extractor_forward.3} parent=1 // loop_exit
      _
    %663 = vsyncpa [#allocation3], 1
    %s664 = scalar_lea.sflag [#allocation3], 1
    %665 = vsyncpa %s664, 1

</llo_original>
